<compile_context>
chip_gen: v7x
topology: tpu7x:2x2x1
jax: 0.10.0
libtpu: 0.0.40
codegen_flags: <defaults>
</compile_context>

<pallas_src>
import jax
import jax.numpy as jnp
from jax.experimental import pallas as pl
from jax.experimental.pallas import tpu as pltpu

LANE = 128      # lane width: hidden/output feature padding target
SUBLANE = 8     # sublane width: batch-tile granularity


def _round_up(x, m):
    return ((x + m - 1) // m) * m


def _fused_mlp_kernel(x_ref, *rest):
    """rest = (w1, w2, ..., wN, b_all_ref, o_ref).

    Computes the whole MLP for one batch tile entirely in VMEM/vregs:
      h = relu(x @ w1 + b1); ...; out = h @ wN + bN   (no ReLU on the last layer).
    Bias for layer i is row i of b_all (padded to the widest layer).
    """
    o_ref = rest[-1]
    b_all_ref = rest[-2]
    w_refs = rest[:-2]
    num_layers = len(w_refs)

    b_all = b_all_ref[...]                       # (num_layers, max_out_pad), tiny
    h = x_ref[...].astype(jnp.float32)           # (tile_b, in_features)
    for i, w_ref in enumerate(w_refs):
        d_out = w_ref.shape[1]                   # padded output width of layer i
        h = jnp.dot(h, w_ref[...], preferred_element_type=jnp.float32)
        h = h + b_all[i:i + 1, :d_out]           # (1, d_out) broadcast over rows
        if i != num_layers - 1:
            h = jnp.maximum(h, 0.0)              # ReLU on hidden layers only
    o_ref[...] = h.astype(o_ref.dtype)


def init_news_model_params(key, layers_size):
    """PyTorch-Linear-style init (U(-1/sqrt(fan_in), 1/sqrt(fan_in))).

    Layer 0 keeps its K dim unpadded (matches the raw input width); every layer's
    output dim (and hence the next layer's K dim) is zero-padded to a multiple of 128
    so all blocks are lane-dense. Zero padding keeps the math exact: padded input
    columns hit zero weight rows and padded hidden units get zero weights + zero bias,
    so they stay exactly 0 through ReLU.

    Returns dict with:
      "weights": list of padded (in_dim_i, out_pad_i) f32 arrays
      "biases":  one (num_layers, max_out_pad) f32 array (row i = layer-i bias, padded)
      "layers_size": the original layer sizes
    """
    num_layers = len(layers_size) - 1
    weights, bias_rows = [], []
    for i in range(1, len(layers_size)):
        fan_in, fan_out = layers_size[i - 1], layers_size[i]
        key, wk, bk = jax.random.split(key, 3)
        bound = 1.0 / float(fan_in) ** 0.5
        w = jax.random.uniform(wk, (fan_in, fan_out), jnp.float32, -bound, bound)
        b = jax.random.uniform(bk, (fan_out,), jnp.float32, -bound, bound)
        # Layer 0: K dim left at the raw input width (no 32->128 padding).
        in_pad = fan_in if i == 1 else _round_up(fan_in, LANE)
        out_pad = _round_up(fan_out, LANE)
        w_p = jnp.zeros((in_pad, out_pad), jnp.float32).at[:fan_in, :fan_out].set(w)
        b_p = jnp.zeros((out_pad,), jnp.float32).at[:fan_out].set(b)
        weights.append(w_p)
        bias_rows.append(b_p)

    max_out_pad = max(w.shape[1] for w in weights)
    b_all = jnp.zeros((num_layers, max_out_pad), jnp.float32)
    for i, b_p in enumerate(bias_rows):
        b_all = b_all.at[i, : b_p.shape[0]].set(b_p)

    return {"weights": weights, "biases": b_all, "layers_size": tuple(layers_size)}


def news_model_forward(params, inputs, *, tile_b=512):
    """Forward pass matching NewsModel.forward as a single fused pallas_call."""
    weights = params["weights"]
    b_all = params["biases"]
    layers_size = params["layers_size"]
    num_layers = len(weights)

    batch, in_features = inputs.shape
    assert in_features == layers_size[0]
    out_features = layers_size[-1]
    out_pad = weights[-1].shape[1]

    # --- batch tiling -------------------------------------------------------
    batch_8 = _round_up(batch, SUBLANE)
    tile_b = max(SUBLANE, min(_round_up(tile_b, SUBLANE), batch_8))
    # v7x megacore: ensure >= 2 grid steps whenever there is enough work, so the
    # "parallel" batch axis can be sharded across both TensorCores.
    if batch_8 >= 2 * SUBLANE:
        tile_b = min(tile_b, _round_up(-(-batch_8 // 2), SUBLANE))
    batch_pad = _round_up(batch, tile_b)
    grid = (batch_pad // tile_b,)

    # Pad only the batch remainder (no full padded copy, no feature padding).
    x = inputs if batch_pad == batch else jnp.pad(inputs, ((0, batch_pad - batch), (0, 0)))

    # --- VMEM residency check (full fusion keeps every weight resident) ------
    itemsize = 4  # f32 params
    weight_bytes = sum(int(w.size) * itemsize for w in weights) + int(b_all.size) * itemsize
    max_width = max([in_features] + [w.shape[1] for w in weights])
    act_bytes = 2 * 2 * tile_b * max_width * itemsize  # in+out tiles, double-buffered
    assert weight_bytes + act_bytes < 48 * 1024 * 1024, (
        "Padded weights + activation tiles exceed the VMEM-residency budget; "
        "this model size needs a layer-/K-blocked grid instead of full fusion."
    )

    # --- specs ----------------------------------------------------------------
    in_specs = [pl.BlockSpec((tile_b, in_features), lambda i: (i, 0))]
    for w in weights:
        # Constant index_map: weights stay VMEM-resident across batch tiles.
        in_specs.append(pl.BlockSpec(w.shape, lambda i: (0, 0)))
    in_specs.append(pl.BlockSpec(b_all.shape, lambda i: (0, 0)))

    out_padded = pl.pallas_call(
        _fused_mlp_kernel,
        out_shape=jax.ShapeDtypeStruct((batch_pad, out_pad), inputs.dtype),
        grid=grid,
        in_specs=in_specs,
        out_specs=pl.BlockSpec((tile_b, out_pad), lambda i: (i, 0)),
        compiler_params=pltpu.CompilerParams(
            dimension_semantics=("parallel",),  # shard batch tiles over v7x's 2 TCs
        ),
    )(x, *weights, b_all)

    return out_padded[:batch, :out_features]


if __name__ == "__main__":
    # Small shapes consistent with the module: an MLP over feature vectors.
    layers_size = (32, 64, 64, 16)  # in -> hidden -> hidden -> out
    batch = 8

    key = jax.random.PRNGKey(0)
    pkey, xkey = jax.random.split(key)
    params = init_news_model_params(pkey, layers_size)
    x = jax.random.normal(xkey, (batch, layers_size[0]), jnp.float32)

    out = news_model_forward(params, x)
    jax.block_until_ready(out)

    # Reference in plain JAX using the UNPADDED parameter slices (same math, no Pallas).
    ref = x
    num_layers = len(layers_size) - 1
    for idx in range(num_layers):
        fan_in, fan_out = layers_size[idx], layers_size[idx + 1]
        w = params["weights"][idx][:fan_in, :fan_out]
        b = params["biases"][idx, :fan_out]
        ref = ref @ w + b
        if idx != num_layers - 1:
            ref = jnp.maximum(ref, 0.0)

    assert out.shape == (batch, layers_size[-1])
    assert jnp.allclose(out, ref, atol=1e-5, rtol=1e-5)

    print("KERNEL_OK")
</pallas_src>

<mosaic_0001>
module attributes {stable_mosaic.version = 11 : i64} {
  func.func @_fused_mlp_kernel(%arg0: i32, %arg1: memref<8x32xf32, #tpu.memory_space<vmem>>, %arg2: memref<32x128xf32, #tpu.memory_space<vmem>>, %arg3: memref<128x128xf32, #tpu.memory_space<vmem>>, %arg4: memref<128x128xf32, #tpu.memory_space<vmem>>, %arg5: memref<3x128xf32, #tpu.memory_space<vmem>>, %arg6: memref<8x128xf32, #tpu.memory_space<vmem>>) attributes {dimension_semantics = [#tpu.dimension_semantics<parallel>], iteration_bounds = array<i64: 1>, scalar_prefetch = 0 : i64, scratch_operands = 0 : i64, tpu.core_type = #tpu.core_type<tc>, window_params = [{transform_indices = @transform_0, window_bounds = array<i64: 8, 32>}, {pipeline_mode = #tpu.pipeline_mode<synchronous>, transform_indices = @transform_1, window_bounds = array<i64: 32, 128>}, {pipeline_mode = #tpu.pipeline_mode<synchronous>, transform_indices = @transform_2, window_bounds = array<i64: 128, 128>}, {pipeline_mode = #tpu.pipeline_mode<synchronous>, transform_indices = @transform_3, window_bounds = array<i64: 128, 128>}, {pipeline_mode = #tpu.pipeline_mode<synchronous>, transform_indices = @transform_4, window_bounds = array<i64: 3, 128>}, {transform_indices = @transform_5, window_bounds = array<i64: 8, 128>}]} {
    %c0 = arith.constant 0 : index
    %c0_0 = arith.constant 0 : index
    %0 = vector.load %arg5[%c0, %c0_0] : memref<3x128xf32, #tpu.memory_space<vmem>>, vector<3x128xf32>
    %c0_1 = arith.constant 0 : index
    %c0_2 = arith.constant 0 : index
    %1 = vector.load %arg1[%c0_1, %c0_2] : memref<8x32xf32, #tpu.memory_space<vmem>>, vector<8x32xf32>
    %c0_3 = arith.constant 0 : index
    %c0_4 = arith.constant 0 : index
    %2 = vector.load %arg2[%c0_3, %c0_4] : memref<32x128xf32, #tpu.memory_space<vmem>>, vector<32x128xf32>
    %cst = arith.constant dense<0.000000e+00> : vector<8x128xf32>
    %3 = tpu.matmul %1, %2, %cst {dimension_numbers = #tpu.dot_dimension_numbers<[1], [0], [0], [1], [0, 0, 1, 1], [], []>} : vector<8x32xf32>, vector<32x128xf32>, vector<8x128xf32> -> vector<8x128xf32>
    %4 = vector.extract_strided_slice %0 {offsets = [0, 0], sizes = [1, 128], strides = [1, 1]} : vector<3x128xf32> to vector<1x128xf32>
    %5 = vector.broadcast %4 : vector<1x128xf32> to vector<8x128xf32>
    %6 = arith.addf %3, %5 : vector<8x128xf32>
    %cst_5 = arith.constant 0.000000e+00 : f32
    %7 = vector.broadcast %cst_5 : f32 to vector<8x128xf32>
    %8 = arith.maximumf %6, %7 : vector<8x128xf32>
    %c0_6 = arith.constant 0 : index
    %c0_7 = arith.constant 0 : index
    %9 = vector.load %arg3[%c0_6, %c0_7] : memref<128x128xf32, #tpu.memory_space<vmem>>, vector<128x128xf32>
    %cst_8 = arith.constant dense<0.000000e+00> : vector<8x128xf32>
    %10 = tpu.matmul %8, %9, %cst_8 {dimension_numbers = #tpu.dot_dimension_numbers<[1], [0], [0], [1], [0, 0, 1, 1], [], []>} : vector<8x128xf32>, vector<128x128xf32>, vector<8x128xf32> -> vector<8x128xf32>
    %11 = vector.extract_strided_slice %0 {offsets = [1, 0], sizes = [1, 128], strides = [1, 1]} : vector<3x128xf32> to vector<1x128xf32>
    %12 = vector.broadcast %11 : vector<1x128xf32> to vector<8x128xf32>
    %13 = arith.addf %10, %12 : vector<8x128xf32>
    %cst_9 = arith.constant 0.000000e+00 : f32
    %14 = vector.broadcast %cst_9 : f32 to vector<8x128xf32>
    %15 = arith.maximumf %13, %14 : vector<8x128xf32>
    %c0_10 = arith.constant 0 : index
    %c0_11 = arith.constant 0 : index
    %16 = vector.load %arg4[%c0_10, %c0_11] : memref<128x128xf32, #tpu.memory_space<vmem>>, vector<128x128xf32>
    %cst_12 = arith.constant dense<0.000000e+00> : vector<8x128xf32>
    %17 = tpu.matmul %15, %16, %cst_12 {dimension_numbers = #tpu.dot_dimension_numbers<[1], [0], [0], [1], [0, 0, 1, 1], [], []>} : vector<8x128xf32>, vector<128x128xf32>, vector<8x128xf32> -> vector<8x128xf32>
    %18 = vector.extract_strided_slice %0 {offsets = [2, 0], sizes = [1, 128], strides = [1, 1]} : vector<3x128xf32> to vector<1x128xf32>
    %19 = vector.broadcast %18 : vector<1x128xf32> to vector<8x128xf32>
    %20 = arith.addf %17, %19 : vector<8x128xf32>
    %c0_13 = arith.constant 0 : index
    %c0_14 = arith.constant 0 : index
    %21 = vector.load %arg6[%c0_13, %c0_14] : memref<8x128xf32, #tpu.memory_space<vmem>>, vector<8x128xf32>
    tpu.vector_store %arg6[%c0_13, %c0_14], %20 {strides = array<i32>} : memref<8x128xf32, #tpu.memory_space<vmem>>, vector<8x128xf32>,
    return
  }
  func.func @transform_0(%arg0: i32) -> (i32, i32) {
    %c0_i32 = arith.constant 0 : i32
    %c0_i32_0 = arith.constant 0 : i32
    return %arg0, %c0_i32 : i32, i32
  }
  func.func @transform_1(%arg0: i32) -> (i32, i32) {
    %c0_i32 = arith.constant 0 : i32
    %c0_i32_0 = arith.constant 0 : i32
    %c0_i32_1 = arith.constant 0 : i32
    return %c0_i32, %c0_i32_0 : i32, i32
  }
  func.func @transform_2(%arg0: i32) -> (i32, i32) {
    %c0_i32 = arith.constant 0 : i32
    %c0_i32_0 = arith.constant 0 : i32
    %c0_i32_1 = arith.constant 0 : i32
    return %c0_i32, %c0_i32_0 : i32, i32
  }
  func.func @transform_3(%arg0: i32) -> (i32, i32) {
    %c0_i32 = arith.constant 0 : i32
    %c0_i32_0 = arith.constant 0 : i32
    %c0_i32_1 = arith.constant 0 : i32
    return %c0_i32, %c0_i32_0 : i32, i32
  }
  func.func @transform_4(%arg0: i32) -> (i32, i32) {
    %c0_i32 = arith.constant 0 : i32
    %c0_i32_0 = arith.constant 0 : i32
    %c0_i32_1 = arith.constant 0 : i32
    return %c0_i32, %c0_i32_0 : i32, i32
  }
  func.func @transform_5(%arg0: i32) -> (i32, i32) {
    %c0_i32 = arith.constant 0 : i32
    %c0_i32_0 = arith.constant 0 : i32
    return %arg0, %c0_i32 : i32, i32
  }
}

</mosaic_0001>

<llo_original>
// kernel: tpu_custom_call.1
$region0: #{tpu_custom_call.1}
  #allocation0 [shape = 'u32[]', space=smem, size = 0x4, offset = 0x4, fixed_abs, tag = 'smem constant byte address 0x4 - core index']
  #allocation1 [shape = 'u32[144,128]{1,0:T(1,128)}', space=vmem, size = 0x12000, scoped, tag = 'internal scratch']
  %s0 = inlined_call_operand.hbm [shape: f32[8,32], index: 0, kind: input, shape index: {}]
  %s1 = inlined_call_operand.hbm [shape: f32[32,128], index: 1, kind: input, shape index: {}]
  %s2 = inlined_call_operand.hbm [shape: f32[128,128], index: 2, kind: input, shape index: {}]
  %s3 = inlined_call_operand.hbm [shape: f32[128,128], index: 3, kind: input, shape index: {}]
  %s4 = inlined_call_operand.vmem [shape: f32[3,128], index: 4, kind: input, shape index: {}]
  %s5 = inlined_call_operand.hbm [shape: f32[8,128], index: 5, kind: output, shape index: {}]
  %s6 = sld [smem:[#allocation0]]
  $region46: #{tpu_custom_call.1} parent=0
    _
  %s8 = ssub.s32 1, %s6
  %s9 = scalar_select 0, %s8, %s6
  $region1: #{tpu_custom_call.1} parent=0
    #allocation2 [shape = 'u8[4096]{0}', space=vmem, size = 0x1000, scoped, tag = 'input window, operand 0, single buffered']
    #allocation3 [shape = 's32[1]{0}', space=sflag, size = 0x4, scoped, tag = 'scoped memory for tpu_custom_call.1']
    #allocation4 [shape = 's32[1]{0}', space=sflag, size = 0x4, scoped, tag = 'scoped memory for tpu_custom_call.1']
    #allocation5 [shape = 'u8[16384]{0}', space=vmem, size = 0x4000, scoped, tag = 'input window, operand 1, single buffered']
    #allocation6 [shape = 's32[1]{0}', space=sflag, size = 0x4, scoped, tag = 'scoped memory for tpu_custom_call.1']
    #allocation7 [shape = 'u8[65536]{0}', space=vmem, size = 0x10000, scoped, tag = 'input window, operand 2, single buffered']
    #allocation8 [shape = 'u8[65536]{0}', space=vmem, size = 0x10000, scoped, tag = 'input window, operand 3, single buffered']
    #allocation9 [shape = 's32[1]{0}', space=sflag, size = 0x4, scoped, tag = 'scoped memory for tpu_custom_call.1']
    #allocation10 [shape = 'u8[4096]{0}', space=vmem, size = 0x1000, scoped, tag = 'output window, operand 0, single buffered']
    %10 = vsyncpa [#allocation3], 0
    %11 = vsyncpa [#allocation6], 0
    %12 = vsyncpa [#allocation9], 0
    %13 = vsyncpa [#allocation4], 0
    // Predicated region
    $region2: #{tpu_custom_call.1} parent=1 // pred_check
      _
    $region3: #{tpu_custom_call.1} parent=1 // pred_check_branch
      %15 = sbr.rel (0) target = $region5
    $region4: #{tpu_custom_call.1} parent=1 // pred_region
      %s17 = ssub.s32 128, 128
      %18 = vsyncadd [#allocation3], %s17
      %s20 = sshll.u32 [#allocation2], 4
      %s21 = int_to_ptr.vmem [resolvable:$true] %s20
      %23 = dma.hbm_to_vmem [thread:$0]  %s0, 128, %s21, [#allocation3]
    $region5: #{tpu_custom_call.1} parent=1 // pred_fallthru
      _
    // Predicated region
    $region6: #{tpu_custom_call.1} parent=1 // pred_check
      _
    $region7: #{tpu_custom_call.1} parent=1 // pred_check_branch
      %25 = sbr.rel (0) target = $region9
    $region8: #{tpu_custom_call.1} parent=1 // pred_region
      %s27 = ssub.s32 512, 512
      %28 = vsyncadd [#allocation6], %s27
      %s29 = sshll.u32 [#allocation5], 4
      %s30 = int_to_ptr.vmem [resolvable:$true] %s29
      %35 = dma.hbm_to_vmem [thread:$0]  %s1, 512, %s30, [#allocation6], 128, 128, 8
    $region9: #{tpu_custom_call.1} parent=1 // pred_fallthru
      _
    // Predicated region
    $region10: #{tpu_custom_call.1} parent=1 // pred_check
      _
    $region11: #{tpu_custom_call.1} parent=1 // pred_check_branch
      %37 = sbr.rel (0) target = $region13
    $region12: #{tpu_custom_call.1} parent=1 // pred_region
      %s39 = ssub.s32 2048, 2048
      %40 = vsyncadd [#allocation6], %s39
      %s41 = sshll.u32 [#allocation7], 4
      %s42 = int_to_ptr.vmem [resolvable:$true] %s41
      %47 = dma.hbm_to_vmem [thread:$0]  %s2, 2048, %s42, [#allocation6], 128, 128, 8
    $region13: #{tpu_custom_call.1} parent=1 // pred_fallthru
      _
    // Predicated region
    $region14: #{tpu_custom_call.1} parent=1 // pred_check
      _
    $region15: #{tpu_custom_call.1} parent=1 // pred_check_branch
      %49 = sbr.rel (0) target = $region17
    $region16: #{tpu_custom_call.1} parent=1 // pred_region
      %s51 = ssub.s32 2048, 2048
      %52 = vsyncadd [#allocation9], %s51
      %s53 = sshll.u32 [#allocation8], 4
      %s54 = int_to_ptr.vmem [resolvable:$true] %s53
      %59 = dma.hbm_to_vmem [thread:$0]  %s3, 2048, %s54, [#allocation9], 128, 128, 8
    $region17: #{tpu_custom_call.1} parent=1 // pred_fallthru
      _
    // Predicated region
    $region18: #{tpu_custom_call.1} parent=1 // pred_check
      _
    $region19: #{tpu_custom_call.1} parent=1 // pred_check_branch
      %61 = sbr.rel (0) target = $region21
    $region20: #{tpu_custom_call.1} parent=1 // pred_region
      _
    $region21: #{tpu_custom_call.1} parent=1 // pred_fallthru
      _
    // Predicated region
    $region22: #{tpu_custom_call.1} parent=1 // pred_check
      _
    $region23: #{tpu_custom_call.1} parent=1 // pred_check_branch
      %63 = sbr.rel (0) target = $region25
    $region24: #{tpu_custom_call.1} parent=1 // pred_region
      %64 = dma.done [#allocation3], 128
    $region25: #{tpu_custom_call.1} parent=1 // pred_fallthru
      _
    // Predicated region
    $region26: #{tpu_custom_call.1} parent=1 // pred_check
      _
    $region27: #{tpu_custom_call.1} parent=1 // pred_check_branch
      %66 = sbr.rel (0) target = $region29
    $region28: #{tpu_custom_call.1} parent=1 // pred_region
      %67 = dma.done [#allocation6], 512
    $region29: #{tpu_custom_call.1} parent=1 // pred_fallthru
      _
    // Predicated region
    $region30: #{tpu_custom_call.1} parent=1 // pred_check
      _
    $region31: #{tpu_custom_call.1} parent=1 // pred_check_branch
      %69 = sbr.rel (0) target = $region33
    $region32: #{tpu_custom_call.1} parent=1 // pred_region
      %70 = dma.done [#allocation6], 2048
    $region33: #{tpu_custom_call.1} parent=1 // pred_fallthru
      _
    // Predicated region
    $region34: #{tpu_custom_call.1} parent=1 // pred_check
      _
    $region35: #{tpu_custom_call.1} parent=1 // pred_check_branch
      %72 = sbr.rel (0) target = $region37
    $region36: #{tpu_custom_call.1} parent=1 // pred_region
      %73 = dma.done [#allocation9], 2048
    $region37: #{tpu_custom_call.1} parent=1 // pred_fallthru
      _
    %v74 = vld [vmem:[%s4] sm:$0x7]
    %v75 = vld [vmem:[#allocation2] sm:$0xff]
    %v76 = vld [vmem:[#allocation5] sm:$0xff]
    %v77 = vld [vmem:[#allocation5 + $0x8] sm:$0xff]
    %v78 = vld [vmem:[#allocation5 + $0x10] sm:$0xff]
    %v79 = vld [vmem:[#allocation5 + $0x18] sm:$0xff]
    %v80 = vlaneseq
    %v81 = vshrl.u32 %v80, 7
    %v82 = vsub.s32 0, %v81
    %v83 = vrot.slane %v74, %v82
    %vm84 = vcmask 261120
    %v86 = vsel %vm84, %v75, 0
    %88 = vmatprep.subr.mxu0 0.0
    %89 = vmatpush1.msra.mxu0 %v76
    %90 = vmatprep.subr.mxu0 0.0
    %91 = vmatpush1.msra.mxu0 %v77
    %92 = vmatprep.subr.mxu0 0.0
    %93 = vmatpush1.msra.mxu0 %v78
    %94 = vmatprep.subr.mxu0 0.0
    %95 = vmatpush1.msra.mxu0 %v79
    %96 = vmatprep.subr.mxu0 0.0
    %97 = vmatpush1.msra.mxu0 0.0
    %98 = vmatprep.subr.mxu0 0.0
    %99 = vmatpush1.msra.mxu0 0.0
    %100 = vmatprep.subr.mxu0 0.0
    %101 = vmatpush1.msra.mxu0 0.0
    %102 = vmatprep.subr.mxu0 0.0
    %103 = vmatpush1.msra.mxu0 0.0
    %104 = vmatprep.subr.mxu0 0.0
    %105 = vmatpush1.msra.mxu0 0.0
    %106 = vmatprep.subr.mxu0 0.0
    %107 = vmatpush1.msra.mxu0 0.0
    %108 = vmatprep.subr.mxu0 0.0
    %109 = vmatpush1.msra.mxu0 0.0
    %110 = vmatprep.subr.mxu0 0.0
    %111 = vmatpush1.msra.mxu0 0.0
    %112 = vmatprep.subr.mxu0 0.0
    %113 = vmatpush1.msra.mxu0 0.0
    %114 = vmatprep.subr.mxu0 0.0
    %115 = vmatpush1.msra.mxu0 0.0
    %116 = vmatprep.subr.mxu0 0.0
    %117 = vmatpush1.msra.mxu0 0.0
    %118 = vmatprep.subr.mxu0 0.0
    %119 = vmatpush1.msra.mxu0 0.0
    %120 = vmatprep.subr.mxu0 0.0
    %121 = vmatpush1.msra.mxu0 0.0
    %122 = vmatprep.subr.mxu0 0.0
    %123 = vmatpush1.msra.mxu0 0.0
    %124 = vmatprep.subr.mxu0 0.0
    %125 = vmatpush1.msra.mxu0 0.0
    %126 = vmatprep.subr.mxu0 0.0
    %127 = vmatpush1.msra.mxu0 0.0
    %128 = vmatprep.subr.mxu0 0.0
    %129 = vmatpush1.msra.mxu0 0.0
    %130 = vmatprep.subr.mxu0 0.0
    %131 = vmatpush1.msra.mxu0 0.0
    %132 = vmatprep.subr.mxu0 0.0
    %133 = vmatpush1.msra.mxu0 0.0
    %134 = vmatprep.subr.mxu0 0.0
    %135 = vmatpush1.msra.mxu0 0.0
    %136 = vmatprep.subr.mxu0 0.0
    %137 = vmatpush1.msra.mxu0 0.0
    %138 = vmatprep.subr.mxu0 0.0
    %139 = vmatpush1.msra.mxu0 0.0
    %140 = vmatprep.subr.mxu0 0.0
    %141 = vmatpush1.msra.mxu0 0.0
    %142 = vmatprep.subr.mxu0 0.0
    %143 = vmatpush1.msra.mxu0 0.0
    %144 = vmatprep.subr.mxu0 0.0
    %145 = vmatpush1.msra.mxu0 0.0
    %146 = vmatprep.subr.mxu0 0.0
    %147 = vmatpush1.msra.mxu0 0.0
    %148 = vmatprep.subr.mxu0 0.0
    %149 = vmatpush1.msra.mxu0 0.0
    %150 = vmatprep.subr.mxu0 0.0
    %151 = vmatpush1.msra.mxu0 0.0
    %152 = vmatprep.mubr.f32.mxu0 0.0
    %153 = vmatmul.mubr.f32.gmra.mrb[0].mxu0 %v86
    %v154 = vpop.f32.mrb[0].mxu0
    %v155 = vadd.f32 %v83, %v154
    %v156 = vpop.f32.mrb[0].mxu0
    %157 = vdwg.mxu0
    %v158 = vmax.f32 %v155, 0.0
    %v159 = vld [vmem:[#allocation7] sm:$0xff]
    %v160 = vld [vmem:[#allocation7 + $0x8] sm:$0xff]
    %v161 = vld [vmem:[#allocation7 + $0x10] sm:$0xff]
    %v162 = vld [vmem:[#allocation7 + $0x18] sm:$0xff]
    %v163 = vld [vmem:[#allocation7 + $0x20] sm:$0xff]
    %v164 = vld [vmem:[#allocation7 + $0x28] sm:$0xff]
    %v165 = vld [vmem:[#allocation7 + $0x30] sm:$0xff]
    %v166 = vld [vmem:[#allocation7 + $0x38] sm:$0xff]
    %v167 = vld [vmem:[#allocation7 + $0x40] sm:$0xff]
    %v168 = vld [vmem:[#allocation7 + $0x48] sm:$0xff]
    %v169 = vld [vmem:[#allocation7 + $0x50] sm:$0xff]
    %v170 = vld [vmem:[#allocation7 + $0x58] sm:$0xff]
    %v171 = vld [vmem:[#allocation7 + $0x60] sm:$0xff]
    %v172 = vld [vmem:[#allocation7 + $0x68] sm:$0xff]
    %v173 = vld [vmem:[#allocation7 + $0x70] sm:$0xff]
    %v174 = vld [vmem:[#allocation7 + $0x78] sm:$0xff]
    %v175 = vlaneseq
    %v176 = vshrl.u32 %v175, 7
    %v177 = vsub.s32 1, %v176
    %v178 = vrot.slane %v74, %v177
    %179 = vmatprep.subr.mxu0 0.0
    %180 = vmatpush1.msra.mxu0 %v159
    %181 = vmatprep.subr.mxu0 0.0
    %182 = vmatpush1.msra.mxu0 %v160
    %183 = vmatprep.subr.mxu0 0.0
    %184 = vmatpush1.msra.mxu0 %v161
    %185 = vmatprep.subr.mxu0 0.0
    %186 = vmatpush1.msra.mxu0 %v162
    %187 = vmatprep.subr.mxu0 0.0
    %188 = vmatpush1.msra.mxu0 %v163
    %189 = vmatprep.subr.mxu0 0.0
    %190 = vmatpush1.msra.mxu0 %v164
    %191 = vmatprep.subr.mxu0 0.0
    %192 = vmatpush1.msra.mxu0 %v165
    %193 = vmatprep.subr.mxu0 0.0
    %194 = vmatpush1.msra.mxu0 %v166
    %195 = vmatprep.subr.mxu0 0.0
    %196 = vmatpush1.msra.mxu0 %v167
    %197 = vmatprep.subr.mxu0 0.0
    %198 = vmatpush1.msra.mxu0 %v168
    %199 = vmatprep.subr.mxu0 0.0
    %200 = vmatpush1.msra.mxu0 %v169
    %201 = vmatprep.subr.mxu0 0.0
    %202 = vmatpush1.msra.mxu0 %v170
    %203 = vmatprep.subr.mxu0 0.0
    %204 = vmatpush1.msra.mxu0 %v171
    %205 = vmatprep.subr.mxu0 0.0
    %206 = vmatpush1.msra.mxu0 %v172
    %207 = vmatprep.subr.mxu0 0.0
    %208 = vmatpush1.msra.mxu0 %v173
    %209 = vmatprep.subr.mxu0 0.0
    %210 = vmatpush1.msra.mxu0 %v174
    %211 = vmatprep.subr.mxu0 0.0
    %212 = vmatpush1.msra.mxu0 0.0
    %213 = vmatprep.subr.mxu0 0.0
    %214 = vmatpush1.msra.mxu0 0.0
    %215 = vmatprep.subr.mxu0 0.0
    %216 = vmatpush1.msra.mxu0 0.0
    %217 = vmatprep.subr.mxu0 0.0
    %218 = vmatpush1.msra.mxu0 0.0
    %219 = vmatprep.subr.mxu0 0.0
    %220 = vmatpush1.msra.mxu0 0.0
    %221 = vmatprep.subr.mxu0 0.0
    %222 = vmatpush1.msra.mxu0 0.0
    %223 = vmatprep.subr.mxu0 0.0
    %224 = vmatpush1.msra.mxu0 0.0
    %225 = vmatprep.subr.mxu0 0.0
    %226 = vmatpush1.msra.mxu0 0.0
    %227 = vmatprep.subr.mxu0 0.0
    %228 = vmatpush1.msra.mxu0 0.0
    %229 = vmatprep.subr.mxu0 0.0
    %230 = vmatpush1.msra.mxu0 0.0
    %231 = vmatprep.subr.mxu0 0.0
    %232 = vmatpush1.msra.mxu0 0.0
    %233 = vmatprep.subr.mxu0 0.0
    %234 = vmatpush1.msra.mxu0 0.0
    %235 = vmatprep.subr.mxu0 0.0
    %236 = vmatpush1.msra.mxu0 0.0
    %237 = vmatprep.subr.mxu0 0.0
    %238 = vmatpush1.msra.mxu0 0.0
    %239 = vmatprep.subr.mxu0 0.0
    %240 = vmatpush1.msra.mxu0 0.0
    %241 = vmatprep.subr.mxu0 0.0
    %242 = vmatpush1.msra.mxu0 0.0
    %243 = vmatprep.mubr.f32.mxu0 0.0
    %244 = vmatmul.mubr.f32.gmra.mrb[0].mxu0 %v158
    %v245 = vpop.f32.mrb[0].mxu0
    %v246 = vadd.f32 %v178, %v245
    %v247 = vpop.f32.mrb[0].mxu0
    %248 = vdwg.mxu0
    %v249 = vmax.f32 %v246, 0.0
    %v250 = vld [vmem:[#allocation8] sm:$0xff]
    %v251 = vld [vmem:[#allocation8 + $0x8] sm:$0xff]
    %v252 = vld [vmem:[#allocation8 + $0x10] sm:$0xff]
    %v253 = vld [vmem:[#allocation8 + $0x18] sm:$0xff]
    %v254 = vld [vmem:[#allocation8 + $0x20] sm:$0xff]
    %v255 = vld [vmem:[#allocation8 + $0x28] sm:$0xff]
    %v256 = vld [vmem:[#allocation8 + $0x30] sm:$0xff]
    %v257 = vld [vmem:[#allocation8 + $0x38] sm:$0xff]
    %v258 = vld [vmem:[#allocation8 + $0x40] sm:$0xff]
    %v259 = vld [vmem:[#allocation8 + $0x48] sm:$0xff]
    %v260 = vld [vmem:[#allocation8 + $0x50] sm:$0xff]
    %v261 = vld [vmem:[#allocation8 + $0x58] sm:$0xff]
    %v262 = vld [vmem:[#allocation8 + $0x60] sm:$0xff]
    %v263 = vld [vmem:[#allocation8 + $0x68] sm:$0xff]
    %v264 = vld [vmem:[#allocation8 + $0x70] sm:$0xff]
    %v265 = vld [vmem:[#allocation8 + $0x78] sm:$0xff]
    %v266 = vlaneseq
    %v267 = vshrl.u32 %v266, 7
    %v268 = vsub.s32 2, %v267
    %v269 = vrot.slane %v74, %v268
    %270 = vmatprep.subr.mxu0 0.0
    %271 = vmatpush1.msra.mxu0 %v250
    %272 = vmatprep.subr.mxu0 0.0
    %273 = vmatpush1.msra.mxu0 %v251
    %274 = vmatprep.subr.mxu0 0.0
    %275 = vmatpush1.msra.mxu0 %v252
    %276 = vmatprep.subr.mxu0 0.0
    %277 = vmatpush1.msra.mxu0 %v253
    %278 = vmatprep.subr.mxu0 0.0
    %279 = vmatpush1.msra.mxu0 %v254
    %280 = vmatprep.subr.mxu0 0.0
    %281 = vmatpush1.msra.mxu0 %v255
    %282 = vmatprep.subr.mxu0 0.0
    %283 = vmatpush1.msra.mxu0 %v256
    %284 = vmatprep.subr.mxu0 0.0
    %285 = vmatpush1.msra.mxu0 %v257
    %286 = vmatprep.subr.mxu0 0.0
    %287 = vmatpush1.msra.mxu0 %v258
    %288 = vmatprep.subr.mxu0 0.0
    %289 = vmatpush1.msra.mxu0 %v259
    %290 = vmatprep.subr.mxu0 0.0
    %291 = vmatpush1.msra.mxu0 %v260
    %292 = vmatprep.subr.mxu0 0.0
    %293 = vmatpush1.msra.mxu0 %v261
    %294 = vmatprep.subr.mxu0 0.0
    %295 = vmatpush1.msra.mxu0 %v262
    %296 = vmatprep.subr.mxu0 0.0
    %297 = vmatpush1.msra.mxu0 %v263
    %298 = vmatprep.subr.mxu0 0.0
    %299 = vmatpush1.msra.mxu0 %v264
    %300 = vmatprep.subr.mxu0 0.0
    %301 = vmatpush1.msra.mxu0 %v265
    %302 = vmatprep.subr.mxu0 0.0
    %303 = vmatpush1.msra.mxu0 0.0
    %304 = vmatprep.subr.mxu0 0.0
    %305 = vmatpush1.msra.mxu0 0.0
    %306 = vmatprep.subr.mxu0 0.0
    %307 = vmatpush1.msra.mxu0 0.0
    %308 = vmatprep.subr.mxu0 0.0
    %309 = vmatpush1.msra.mxu0 0.0
    %310 = vmatprep.subr.mxu0 0.0
    %311 = vmatpush1.msra.mxu0 0.0
    %312 = vmatprep.subr.mxu0 0.0
    %313 = vmatpush1.msra.mxu0 0.0
    %314 = vmatprep.subr.mxu0 0.0
    %315 = vmatpush1.msra.mxu0 0.0
    %316 = vmatprep.subr.mxu0 0.0
    %317 = vmatpush1.msra.mxu0 0.0
    %318 = vmatprep.subr.mxu0 0.0
    %319 = vmatpush1.msra.mxu0 0.0
    %320 = vmatprep.subr.mxu0 0.0
    %321 = vmatpush1.msra.mxu0 0.0
    %322 = vmatprep.subr.mxu0 0.0
    %323 = vmatpush1.msra.mxu0 0.0
    %324 = vmatprep.subr.mxu0 0.0
    %325 = vmatpush1.msra.mxu0 0.0
    %326 = vmatprep.subr.mxu0 0.0
    %327 = vmatpush1.msra.mxu0 0.0
    %328 = vmatprep.subr.mxu0 0.0
    %329 = vmatpush1.msra.mxu0 0.0
    %330 = vmatprep.subr.mxu0 0.0
    %331 = vmatpush1.msra.mxu0 0.0
    %332 = vmatprep.subr.mxu0 0.0
    %333 = vmatpush1.msra.mxu0 0.0
    %334 = vmatprep.mubr.f32.mxu0 0.0
    %335 = vmatmul.mubr.f32.gmra.mrb[0].mxu0 %v249
    %v336 = vpop.f32.mrb[0].mxu0
    %v337 = vadd.f32 %v269, %v336
    %v338 = vpop.f32.mrb[0].mxu0
    %339 = vdwg.mxu0
    %340 = vst [vmem:[#allocation10] sm:$0xff] %v337
    // Predicated region
    $region38: #{tpu_custom_call.1} parent=1 // pred_check
      _
    $region39: #{tpu_custom_call.1} parent=1 // pred_check_branch
      %342 = sbr.rel (0) target = $region41
    $region40: #{tpu_custom_call.1} parent=1 // pred_region
      %s344 = ssub.s32 128, 128
      %345 = vsyncadd [#allocation4], %s344
      %s347 = sshll.u32 [#allocation10], 4
      %s348 = int_to_ptr.vmem [resolvable:$true] %s347
      %350 = dma.vmem_to_hbm [thread:$0]  %s348, 128, %s5, [#allocation4]
    $region41: #{tpu_custom_call.1} parent=1 // pred_fallthru
      _
    // Predicated region
    $region42: #{tpu_custom_call.1} parent=1 // pred_check
      _
    $region43: #{tpu_custom_call.1} parent=1 // pred_check_branch
      %352 = sbr.rel (0) target = $region45
    $region44: #{tpu_custom_call.1} parent=1 // pred_region
      %353 = dma.done [#allocation4], 128
    $region45: #{tpu_custom_call.1} parent=1 // pred_fallthru
      _
    %354 = vsyncpa [#allocation3], 1
    %355 = vsyncpa [#allocation6], 1
    %356 = vsyncpa [#allocation9], 1
    %357 = vsyncpa [#allocation4], 1

</llo_original>
